<compile_context>
chip_gen: v5e
topology: v5e:2x2
jax: 0.10.0
libtpu: 0.0.40
codegen_flags: <defaults>
</compile_context>

<pallas_src>
import jax
import jax.numpy as jnp
from jax import lax
from jax.experimental import pallas as pl
from jax.experimental.pallas import tpu as pltpu


def _round_up(x, m):
    return ((x + m - 1) // m) * m


_VMEM_LIMIT_BYTES = 48 * 1024 * 1024       # explicit scoped-VMEM limit (fits v7x 64 MiB/TC)
_TILE_VMEM_BUDGET = 36 * 1024 * 1024       # what we size tiles against (headroom vs limit)
_DMA_TARGET_PER_INPUT = 8 * 1024 * 1024    # ~8 MiB per input per grid step


def _make_kernel(margin, b_valid, tb, needs_row_mask):
    def kernel(o1_ref, o2_ref, label_ref, out_ref):
        i = pl.program_id(0)
        o1 = o1_ref[...].astype(jnp.float32)              # (tb, D)
        o2 = o2_ref[...].astype(jnp.float32)              # (tb, D)
        # F.pairwise_distance adds eps=1e-6 to the difference before the norm.
        diff = (o1 - o2) + jnp.float32(1e-6)
        sumsq = jnp.sum(diff * diff, axis=-1, keepdims=True)   # (tb, 1) == d^2

        label = label_ref[...].astype(jnp.float32)        # (tb, 1)
        pos = (1.0 - label) * sumsq                       # use d^2 directly (no sqrt^2)
        dist = jnp.sqrt(sumsq)
        clamped = jnp.maximum(jnp.float32(margin) - dist, 0.0)
        per_row = pos + label * clamped * clamped         # (tb, 1)

        if needs_row_mask:
            # Boundary block of a ragged grid: the rows past B hold unspecified
            # VMEM data; select (not multiply) so NaN/Inf never reaches the sum.
            row = lax.broadcasted_iota(jnp.int32, (tb, 1), 0) + i * tb
            per_row = jnp.where(row < b_valid, per_row, 0.0)

        partial = jnp.sum(per_row)
        # Lane-dense (8,128) output slab per grid step; reduced in the wrapper.
        out_ref[...] = jnp.full((1, 8, 128), partial, dtype=jnp.float32)

    return kernel


def contrastive_loss(output1, output2, label, margin=2.0):
    """Pallas TPU ContrastiveLoss forward.

    output1, output2: (B, D) float arrays (f32 or bf16; bf16 stays bf16 in HBM)
    label:            (B, 1) or (B,) float array (0 = similar, 1 = dissimilar)
    returns:          scalar float32 loss
    """
    B, D = output1.shape
    assert output2.shape == (B, D)
    if label.ndim == 1:
        label = label.reshape(B, 1)
    assert label.shape == (B, 1)

    isz = jnp.dtype(output1.dtype).itemsize
    d_lanes = _round_up(D, 128)   # lane-padded VMEM width of one input row

    # Conservative per-row VMEM accounting:
    #   2 inputs x 2 pipeline buffers (lane-padded)            -> 4 * d_lanes * isz
    #   ~3 full-width f32 intermediates (upcasts / diff / sq)  -> 12 * d_lanes
    #   lane-padded (tb,1) label, 2 buffers                    -> 2 * 128 * 4
    #   a few (tb,1)->(tb,128) f32 temps (sumsq/dist/per_row)  -> 4 * 128 * 4
    per_row_vmem = 4 * d_lanes * isz + 12 * d_lanes + 2 * 128 * 4 + 4 * 128 * 4
    tb_vmem = max(8, (_TILE_VMEM_BUDGET // per_row_vmem) // 8 * 8)

    # Per-step DMA byte target (~8 MiB of HBM traffic per input per step) so the
    # fixed ~0.35 us/step overhead is amortized even for small D.
    tb_dma = _round_up(max(8, pl.cdiv(_DMA_TARGET_PER_INPUT, D * isz)), 8)

    tb = min(tb_vmem, tb_dma)

    if B <= 8:
        # Single block; block dim == full array dim satisfies the tiling rule.
        tb = B
    elif pl.cdiv(B, tb) == 1:
        # Whole batch fits in one tile: split into two grid steps so the
        # "parallel" axis can use both v7x TensorCores (negligible cost on
        # single-TC v5e/v6e).
        tb = _round_up(pl.cdiv(B, 2), 8)

    grid_n = pl.cdiv(B, tb)
    needs_row_mask = (B % tb) != 0

    kernel = _make_kernel(margin, B, tb, needs_row_mask)

    out = pl.pallas_call(
        kernel,
        out_shape=jax.ShapeDtypeStruct((grid_n, 8, 128), jnp.float32),
        grid_spec=pltpu.PrefetchScalarGridSpec(
            num_scalar_prefetch=0,
            grid=(grid_n,),
            in_specs=[
                pl.BlockSpec((tb, D), lambda i: (i, 0)),   # full-D block: no pad, no col mask
                pl.BlockSpec((tb, D), lambda i: (i, 0)),
                pl.BlockSpec((tb, 1), lambda i: (i, 0)),
            ],
            out_specs=pl.BlockSpec((1, 8, 128), lambda i: (i, 0, 0)),
        ),
        compiler_params=pltpu.CompilerParams(
            dimension_semantics=("parallel",),
            vmem_limit_bytes=_VMEM_LIMIT_BYTES,
        ),
    )(output1, output2, label)

    # Final reduction in f32 in the wrapper; divide by the true batch size.
    return jnp.sum(out[:, 0, 0]) / jnp.float32(B)


def _reference(output1, output2, label, margin=2.0):
    diff = output1.astype(jnp.float32) - output2.astype(jnp.float32) + 1e-6
    dist = jnp.sqrt(jnp.sum(diff * diff, axis=-1, keepdims=True))
    lbl = label.astype(jnp.float32)
    return jnp.mean((1.0 - lbl) * dist ** 2
                    + lbl * jnp.square(jnp.maximum(margin - dist, 0.0)))


if __name__ == "__main__":
    B, D = 8, 32
    key = jax.random.PRNGKey(0)
    k1, k2, k3 = jax.random.split(key, 3)
    output1 = jax.random.normal(k1, (B, D), dtype=jnp.float32)
    output2 = jax.random.normal(k2, (B, D), dtype=jnp.float32)
    label = jax.random.bernoulli(k3, 0.5, (B, 1)).astype(jnp.float32)

    loss = contrastive_loss(output1, output2, label, margin=2.0)
    jax.block_until_ready(loss)
    ref = _reference(output1, output2, label, margin=2.0)
    assert jnp.allclose(loss, ref, rtol=1e-5, atol=1e-5), (loss, ref)

    # Ragged batch + non-128-multiple feature dim: exercises the cdiv grid,
    # the in-kernel row mask, and the two-step split (no wrapper-side padding).
    B2, D2 = 300, 200
    o1b = jax.random.normal(k1, (B2, D2), dtype=jnp.float32)
    o2b = jax.random.normal(k2, (B2, D2), dtype=jnp.float32)
    lb = jax.random.bernoulli(k3, 0.5, (B2, 1)).astype(jnp.float32)
    loss2 = contrastive_loss(o1b, o2b, lb, margin=2.0)
    jax.block_until_ready(loss2)
    ref2 = _reference(o1b, o2b, lb, margin=2.0)
    assert jnp.allclose(loss2, ref2, rtol=1e-5, atol=1e-5), (loss2, ref2)

    # bf16 inputs stay bf16 in HBM; compute is upcast to f32 in-kernel.
    o1c = o1b.astype(jnp.bfloat16)
    o2c = o2b.astype(jnp.bfloat16)
    loss3 = contrastive_loss(o1c, o2c, lb, margin=2.0)
    jax.block_until_ready(loss3)
    ref3 = _reference(o1c, o2c, lb, margin=2.0)
    assert jnp.allclose(loss3, ref3, rtol=1e-5, atol=1e-5), (loss3, ref3)

    print("KERNEL_OK")
</pallas_src>

<mosaic_0001>
module attributes {stable_mosaic.version = 11 : i64} {
  func.func @kernel(%arg0: i32, %arg1: memref<8x32xf32, #tpu.memory_space<vmem>>, %arg2: memref<8x32xf32, #tpu.memory_space<vmem>>, %arg3: memref<8x1xf32, #tpu.memory_space<vmem>>, %arg4: memref<1x8x128xf32, #tpu.memory_space<vmem>>) attributes {dimension_semantics = [#tpu.dimension_semantics<parallel>], iteration_bounds = array<i64: 1>, scalar_prefetch = 0 : i64, scratch_operands = 0 : i64, tpu.core_type = #tpu.core_type<tc>, window_params = [{transform_indices = @transform_0, window_bounds = array<i64: 8, 32>}, {transform_indices = @transform_1, window_bounds = array<i64: 8, 32>}, {transform_indices = @transform_2, window_bounds = array<i64: 8, 1>}, {transform_indices = @transform_3, window_bounds = array<i64: 1, 8, 128>}]} {
    %c0 = arith.constant 0 : index
    %c0_0 = arith.constant 0 : index
    %0 = vector.load %arg1[%c0, %c0_0] : memref<8x32xf32, #tpu.memory_space<vmem>>, vector<8x32xf32>
    %c0_1 = arith.constant 0 : index
    %c0_2 = arith.constant 0 : index
    %1 = vector.load %arg2[%c0_1, %c0_2] : memref<8x32xf32, #tpu.memory_space<vmem>>, vector<8x32xf32>
    %2 = arith.subf %0, %1 : vector<8x32xf32>
    %cst = arith.constant 9.99999997E-7 : f32
    %3 = vector.broadcast %cst : f32 to vector<8x32xf32>
    %4 = arith.addf %2, %3 : vector<8x32xf32>
    %5 = arith.mulf %4, %4 : vector<8x32xf32>
    %cst_3 = arith.constant dense<0.000000e+00> : vector<8xf32>
    %6 = vector.multi_reduction <add>, %5, %cst_3 [1] : vector<8x32xf32> to vector<8xf32>
    %7 = vector.shape_cast %6 : vector<8xf32> to vector<8x1xf32>
    %c0_4 = arith.constant 0 : index
    %c0_5 = arith.constant 0 : index
    %8 = vector.load %arg3[%c0_4, %c0_5] : memref<8x1xf32, #tpu.memory_space<vmem>>, vector<8x1xf32>
    %cst_6 = arith.constant 1.000000e+00 : f32
    %9 = vector.broadcast %cst_6 : f32 to vector<8x1xf32>
    %10 = arith.subf %9, %8 : vector<8x1xf32>
    %11 = arith.mulf %10, %7 : vector<8x1xf32>
    %12 = math.sqrt %7 : vector<8x1xf32>
    %cst_7 = arith.constant 2.000000e+00 : f32
    %13 = vector.broadcast %cst_7 : f32 to vector<8x1xf32>
    %14 = arith.subf %13, %12 : vector<8x1xf32>
    %cst_8 = arith.constant 0.000000e+00 : f32
    %15 = vector.broadcast %cst_8 : f32 to vector<8x1xf32>
    %16 = arith.maximumf %14, %15 : vector<8x1xf32>
    %17 = arith.mulf %8, %16 : vector<8x1xf32>
    %18 = arith.mulf %17, %16 : vector<8x1xf32>
    %19 = arith.addf %11, %18 : vector<8x1xf32>
    %20 = vector.shape_cast %19 : vector<8x1xf32> to vector<1x8x1xf32>
    %cst_9 = arith.constant dense<0.000000e+00> : vector<1xf32>
    %21 = vector.multi_reduction <add>, %20, %cst_9 [1, 2] : vector<1x8x1xf32> to vector<1xf32>
    %22 = vector.shape_cast %21 : vector<1xf32> to vector<1x1x1xf32>
    %23 = vector.extract %22[0, 0, 0] : f32 from vector<1x1x1xf32>
    %24 = vector.broadcast %23 : f32 to vector<1x8x128xf32>
    %c0_10 = arith.constant 0 : index
    %c0_11 = arith.constant 0 : index
    %c0_12 = arith.constant 0 : index
    %25 = vector.load %arg4[%c0_10, %c0_11, %c0_12] : memref<1x8x128xf32, #tpu.memory_space<vmem>>, vector<1x8x128xf32>
    tpu.vector_store %arg4[%c0_10, %c0_11, %c0_12], %24 {strides = array<i32>} : memref<1x8x128xf32, #tpu.memory_space<vmem>>, vector<1x8x128xf32>,
    return
  }
  func.func @transform_0(%arg0: i32) -> (i32, i32) {
    %c0_i32 = arith.constant 0 : i32
    %c0_i32_0 = arith.constant 0 : i32
    return %arg0, %c0_i32 : i32, i32
  }
  func.func @transform_1(%arg0: i32) -> (i32, i32) {
    %c0_i32 = arith.constant 0 : i32
    %c0_i32_0 = arith.constant 0 : i32
    return %arg0, %c0_i32 : i32, i32
  }
  func.func @transform_2(%arg0: i32) -> (i32, i32) {
    %c0_i32 = arith.constant 0 : i32
    %c0_i32_0 = arith.constant 0 : i32
    return %arg0, %c0_i32 : i32, i32
  }
  func.func @transform_3(%arg0: i32) -> (i32, i32, i32) {
    %c0_i32 = arith.constant 0 : i32
    %c0_i32_0 = arith.constant 0 : i32
    %c0_i32_1 = arith.constant 0 : i32
    return %arg0, %c0_i32, %c0_i32_0 : i32, i32, i32
  }
}

</mosaic_0001>

<llo_original>
// kernel: tpu_custom_call.1
$region0: #{tpu_custom_call.1}
  #allocation0 [shape = 'u32[]', space=smem, size = 0x4, offset = 0x4, fixed_abs, tag = 'smem constant byte address 0x4 - core index']
  #allocation1 [shape = 'u32[72,128]{1,0:T(1,128)}', space=vmem, size = 0x9000, scoped, tag = 'internal scratch']
  %s0 = inlined_call_operand.vmem [shape: f32[8,32], index: 0, kind: input, shape index: {}]
  %s1 = inlined_call_operand.hbm [shape: f32[8,32], index: 1, kind: input, shape index: {}]
  %s2 = inlined_call_operand.vmem [shape: f32[8,1], index: 2, kind: input, shape index: {}]
  %s3 = inlined_call_operand.hbm [shape: f32[1,8,128], index: 3, kind: output, shape index: {}]
  %s4 = sld [smem:[#allocation0]]
  $region26: #{tpu_custom_call.1} parent=0
    _
  %s6 = ssub.s32 1, %s4
  %s7 = scalar_select 0, %s6, %s4
  $region1: #{tpu_custom_call.1} parent=0
    #allocation2 [shape = 'u8[4096]{0}', space=vmem, size = 0x1000, scoped, tag = 'input window, operand 1, single buffered']
    #allocation3 [shape = 's32[1]{0}', space=sflag, size = 0x4, scoped, tag = 'scoped memory for tpu_custom_call.1']
    #allocation4 [shape = 's32[1]{0}', space=sflag, size = 0x4, scoped, tag = 'scoped memory for tpu_custom_call.1']
    #allocation5 [shape = 'u8[4096]{0}', space=vmem, size = 0x1000, scoped, tag = 'output window, operand 0, single buffered']
    %8 = vsyncpa [#allocation3], 0
    %9 = vsyncpa [#allocation4], 0
    // Predicated region
    $region2: #{tpu_custom_call.1} parent=1 // pred_check
      _
    $region3: #{tpu_custom_call.1} parent=1 // pred_check_branch
      %11 = sbr.rel (0) target = $region5
    $region4: #{tpu_custom_call.1} parent=1 // pred_region
      _
    $region5: #{tpu_custom_call.1} parent=1 // pred_fallthru
      _
    // Predicated region
    $region6: #{tpu_custom_call.1} parent=1 // pred_check
      _
    $region7: #{tpu_custom_call.1} parent=1 // pred_check_branch
      %13 = sbr.rel (0) target = $region9
    $region8: #{tpu_custom_call.1} parent=1 // pred_region
      %15 = vsyncadd [#allocation3], 0
      %s17 = sshll.u32 %s1, 4
      %s18 = int_to_ptr.hbm [resolvable:$true] %s17
      %s19 = sshll.u32 [#allocation2], 4
      %s20 = int_to_ptr.vmem [resolvable:$true] %s19
      %22 = dma.hbm_to_vmem [thread:$0]  %s18, 128, %s20, [#allocation3]
    $region9: #{tpu_custom_call.1} parent=1 // pred_fallthru
      _
    // Predicated region
    $region10: #{tpu_custom_call.1} parent=1 // pred_check
      _
    $region11: #{tpu_custom_call.1} parent=1 // pred_check_branch
      %24 = sbr.rel (0) target = $region13
    $region12: #{tpu_custom_call.1} parent=1 // pred_region
      _
    $region13: #{tpu_custom_call.1} parent=1 // pred_fallthru
      _
    // Predicated region
    $region14: #{tpu_custom_call.1} parent=1 // pred_check
      _
    $region15: #{tpu_custom_call.1} parent=1 // pred_check_branch
      %26 = sbr.rel (0) target = $region17
    $region16: #{tpu_custom_call.1} parent=1 // pred_region
      %28 = dma.done [#allocation3], 128
    $region17: #{tpu_custom_call.1} parent=1 // pred_fallthru
      _
    %v29 = vld [vmem:[%s0] sm:$0xff]
    %v30 = vld [vmem:[#allocation2] sm:$0xff]
    %v31 = vsub.f32 %v29, %v30
    %v32 = vadd.f32 %v31, 1e-06
    %v33 = vmul.f32 %v32, %v32
    %vm34 = vcmask 261120
    %v35 = vsel %vm34, %v33, 0.0
    %36 = vadd.xlane.f32.xlu0 %v35
    %v37 = vpop.xlane.xlu0 %36
    %v38 = vld [vmem:[%s2] sm:$0xff]
    %v39 = vsub.f32 1.0, %v38
    %v40 = vmul.f32 %v39, %v37
    %v41 = vrsqrt.pop %v37
    %v42 = vmul.f32 %v41, %v37
    %v43 = vmul.f32 %v42, %v41
    %v44 = vmul.f32 0.5, %v43
    %v45 = vsub.f32 1.5, %v44
    %v46 = vmul.f32 %v41, %v45
    %v47 = vmul.f32 %v37, %v46
    %vm48 = vcmp.eq.f32.partialorder %v37, inf
    %v49 = vsel %vm48, %v37, %v47
    %vm50 = vcmp.eq.f32.partialorder %v37, 0.0
    %v51 = vand.u32 %v37, 2147483648
    %v52 = vsel %vm50, %v51, %v49
    %v53 = vsub.f32 2.0, %v52
    %v54 = vmax.f32 %v53, 0.0
    %v55 = vmul.f32 %v38, %v54
    %v56 = vmul.f32 %v55, %v54
    %v57 = vadd.f32 %v40, %v56
    %vm58 = vcmask 7168
    %v59 = vsel %vm58, %v57, 0.0
    %60 = vadd.xlane.f32.xlu0 %v59
    %v61 = vpop.xlane.xlu0 %60
    %v62 = vrot.slane %v61, 4
    %v63 = vadd.f32 %v61, %v62
    %v64 = vrot.slane %v63, 2
    %v65 = vadd.f32 %v63, %v64
    %v66 = vrot.slane %v65, 1
    %v67 = vadd.f32 %v65, %v66
    %s68 = vtos %v67
    %v69 = vstv %s68
    %70 = vst [vmem:[#allocation5] sm:$0xff] %v69
    // Predicated region
    $region18: #{tpu_custom_call.1} parent=1 // pred_check
      _
    $region19: #{tpu_custom_call.1} parent=1 // pred_check_branch
      %72 = sbr.rel (0) target = $region21
    $region20: #{tpu_custom_call.1} parent=1 // pred_region
      %74 = vsyncadd [#allocation4], 0
      %s76 = sshll.u32 [#allocation5], 4
      %s77 = int_to_ptr.vmem [resolvable:$true] %s76
      %s78 = sshll.u32 %s3, 4
      %s79 = int_to_ptr.hbm [resolvable:$true] %s78
      %81 = dma.vmem_to_hbm [thread:$0]  %s77, 128, %s79, [#allocation4]
    $region21: #{tpu_custom_call.1} parent=1 // pred_fallthru
      _
    // Predicated region
    $region22: #{tpu_custom_call.1} parent=1 // pred_check
      _
    $region23: #{tpu_custom_call.1} parent=1 // pred_check_branch
      %83 = sbr.rel (0) target = $region25
    $region24: #{tpu_custom_call.1} parent=1 // pred_region
      %85 = dma.done [#allocation4], 128
    $region25: #{tpu_custom_call.1} parent=1 // pred_fallthru
      _
    %86 = vsyncpa [#allocation3], 1
    %87 = vsyncpa [#allocation4], 1

</llo_original>
